<compile_context>
chip_gen: v5e
topology: v5e:2x2
jax: 0.10.0
libtpu: 0.0.40
codegen_flags: <defaults>
</compile_context>

<pallas_src>
import jax
import jax.numpy as jnp
from jax.experimental import pallas as pl
from jax.experimental.pallas import tpu as pltpu


def _round_up(n: int, m: int) -> int:
    return ((n + m - 1) // m) * m


def _cdiv(a: int, b: int) -> int:
    return -(-a // b)


def _actor_kernel(x_ref, w1_ref, b1_ref, w2_ref, b2_ref, w3_ref, b3_ref,
                  scale_ref, abias_ref, o_ref):
    wdt = w1_ref.dtype
    # fc1 + ReLU  (f32 accumulation on the MXU)
    h1 = jnp.dot(x_ref[...].astype(wdt), w1_ref[...],
                 preferred_element_type=jnp.float32)
    h1 = jnp.maximum(h1 + b1_ref[...], 0.0)
    # fc2 + ReLU
    h2 = jnp.dot(h1.astype(wdt), w2_ref[...],
                 preferred_element_type=jnp.float32)
    h2 = jnp.maximum(h2 + b2_ref[...], 0.0)
    # fc_mu + tanh, then affine rescale to the action range
    mu = jnp.dot(h2.astype(wdt), w3_ref[...],
                 preferred_element_type=jnp.float32) + b3_ref[...]
    out = jnp.tanh(mu) * scale_ref[...] + abias_ref[...]
    o_ref[...] = out.astype(o_ref.dtype)


def _choose_batch_tiling(B: int, tile_m: int) -> tuple[int, int]:
    """Balanced batch tiles: (tile_rows, padded_batch)."""
    n_blocks = max(1, _cdiv(B, tile_m))
    # Give the "parallel" batch axis >= 2 blocks once there is real work, so
    # 2-TC parts (v7x) shard it; negligible overhead on 1-TC v5e/v6e.
    if B >= 256:
        n_blocks = max(n_blocks, 2)
    tm = _round_up(_cdiv(B, n_blocks), 8)
    return tm, tm * n_blocks


def actor_forward(x, params, *, tile_m: int = 512):
    """x: (B, obs_dim) f32 -> actions (B, act_dim) f32."""
    w1 = params["w1"]; b1 = params["b1"]
    w2 = params["w2"]; b2 = params["b2"]
    w3 = params["w3"]; b3 = params["b3"]
    scale = params["action_scale"]; abias = params["action_bias"]
    act_dim = params["act_dim"]

    B, obs = x.shape
    K, H1 = w1.shape            # K == obs_dim (unpadded), H1 padded hidden1
    H2 = w2.shape[1]            # padded hidden2
    A = w3.shape[1]             # padded (lane-dense) action dim
    assert obs == K, f"x feature dim {obs} != w1 in-dim {K}"

    tm, B_pad = _choose_batch_tiling(B, tile_m)

    x_pad = x.astype(jnp.float32)
    if B_pad != B:
        x_pad = jnp.pad(x_pad, ((0, B_pad - B), (0, 0)))

    out = pl.pallas_call(
        _actor_kernel,
        out_shape=jax.ShapeDtypeStruct((B_pad, A), jnp.float32),
        grid=(B_pad // tm,),
        in_specs=[
            pl.BlockSpec((tm, K), lambda i: (i, 0)),     # x tile (pipelined)
            pl.BlockSpec((K, H1), lambda i: (0, 0)),     # weights: resident
            pl.BlockSpec((1, H1), lambda i: (0, 0)),
            pl.BlockSpec((H1, H2), lambda i: (0, 0)),
            pl.BlockSpec((1, H2), lambda i: (0, 0)),
            pl.BlockSpec((H2, A), lambda i: (0, 0)),
            pl.BlockSpec((1, A), lambda i: (0, 0)),
            pl.BlockSpec((1, A), lambda i: (0, 0)),      # action_scale
            pl.BlockSpec((1, A), lambda i: (0, 0)),      # action_bias
        ],
        out_specs=pl.BlockSpec((tm, A), lambda i: (i, 0)),
        compiler_params=pltpu.CompilerParams(
            dimension_semantics=("parallel",)),
    )(x_pad, w1, b1, w2, b2, w3, b3, scale, abias)

    return out[:B, :act_dim]


def init_actor_params(key, obs_dim, act_dim, action_high, action_low,
                      h1=400, h2=300, weight_dtype=jnp.bfloat16):
    """PyTorch-Linear-style init, padded to TPU-friendly lane multiples.

    Weights are stored as (in_features, out_features) so the kernel computes
    y = x @ W + b (== PyTorch x @ W.T + b with W.T pre-applied).  Only the
    hidden/action dims are padded; the obs dim stays at its natural size.
    Note: with the default bf16 weights, results differ from an all-f32
    reference by ~1e-2 relative (acceptable for a DDPG actor).
    """
    H1 = _round_up(h1, 128)       # 400 -> 512
    H2 = _round_up(h2, 128)       # 300 -> 384
    A = _round_up(act_dim, 128)   # 4   -> 128  (lane-dense output)

    ks = jax.random.split(key, 6)

    def linear(kw, kb, fan_in, fan_out, pad_in, pad_out):
        bound = 1.0 / jnp.sqrt(jnp.float32(fan_in))
        w = jax.random.uniform(kw, (fan_in, fan_out), jnp.float32, -bound, bound)
        b = jax.random.uniform(kb, (fan_out,), jnp.float32, -bound, bound)
        w_p = jnp.zeros((pad_in, pad_out), jnp.float32).at[:fan_in, :fan_out].set(w)
        b_p = jnp.zeros((1, pad_out), jnp.float32).at[0, :fan_out].set(b)
        return w_p.astype(weight_dtype), b_p

    w1, b1 = linear(ks[0], ks[1], obs_dim, h1, obs_dim, H1)   # no obs padding
    w2, b2 = linear(ks[2], ks[3], h1, h2, H1, H2)
    w3, b3 = linear(ks[4], ks[5], h2, act_dim, H2, A)

    action_high = jnp.asarray(action_high, jnp.float32).reshape(-1)
    action_low = jnp.asarray(action_low, jnp.float32).reshape(-1)
    scale = jnp.zeros((1, A), jnp.float32).at[0, :act_dim].set(
        (action_high - action_low) / 2.0)
    abias = jnp.zeros((1, A), jnp.float32).at[0, :act_dim].set(
        (action_high + action_low) / 2.0)

    return {
        "w1": w1, "b1": b1, "w2": w2, "b2": b2, "w3": w3, "b3": b3,
        "action_scale": scale, "action_bias": abias,
        "obs_dim": obs_dim, "act_dim": act_dim,
    }


def _actor_reference(x, params):
    """Pure-JAX reference mirroring the kernel's cast/accumulate path."""
    wdt = params["w1"].dtype
    w1 = params["w1"]; b1 = params["b1"]
    w2 = params["w2"]; b2 = params["b2"]
    w3 = params["w3"]; b3 = params["b3"]
    h = jnp.dot(x.astype(wdt), w1, preferred_element_type=jnp.float32) + b1
    h = jnp.maximum(h, 0.0)
    h = jnp.dot(h.astype(wdt), w2, preferred_element_type=jnp.float32) + b2
    h = jnp.maximum(h, 0.0)
    mu = jnp.dot(h.astype(wdt), w3, preferred_element_type=jnp.float32) + b3
    out = jnp.tanh(mu) * params["action_scale"] + params["action_bias"]
    return out[:, :params["act_dim"]]


if __name__ == "__main__":
    key = jax.random.PRNGKey(0)
    k_obs, k_obs2, k_par = jax.random.split(key, 3)

    obs_dim = 16      # env.single_observation_space.shape -> (16,)
    act_dim = 4       # env.single_action_space.shape -> (4,)
    action_high = jnp.full((act_dim,), 2.0, jnp.float32)
    action_low = jnp.full((act_dim,), -2.0, jnp.float32)

    params = init_actor_params(k_par, obs_dim, act_dim, action_high, action_low)

    # Case 1: tiny inference batch (single tile, padded batch only).
    batch = 2
    x = jax.random.normal(k_obs, (batch, obs_dim), jnp.float32)
    out = jax.block_until_ready(actor_forward(x, params))
    ref = _actor_reference(x.astype(jnp.float32), params)
    assert out.shape == (batch, act_dim)
    assert jnp.allclose(out, ref, atol=5e-3, rtol=5e-3)

    # Case 2: larger batch exercising the multi-block "parallel" grid path.
    batch2 = 260
    x2 = jax.random.normal(k_obs2, (batch2, obs_dim), jnp.float32)
    out2 = jax.block_until_ready(actor_forward(x2, params))
    ref2 = _actor_reference(x2.astype(jnp.float32), params)
    assert out2.shape == (batch2, act_dim)
    assert jnp.allclose(out2, ref2, atol=5e-3, rtol=5e-3)

    print("KERNEL_OK")
</pallas_src>

<mosaic_0001>
module attributes {stable_mosaic.version = 11 : i64} {
  func.func @_actor_kernel(%arg0: i32, %arg1: memref<8x16xf32, #tpu.memory_space<vmem>>, %arg2: memref<16x512xbf16, #tpu.memory_space<vmem>>, %arg3: memref<1x512xf32, #tpu.memory_space<vmem>>, %arg4: memref<512x384xbf16, #tpu.memory_space<vmem>>, %arg5: memref<1x384xf32, #tpu.memory_space<vmem>>, %arg6: memref<384x128xbf16, #tpu.memory_space<vmem>>, %arg7: memref<1x128xf32, #tpu.memory_space<vmem>>, %arg8: memref<1x128xf32, #tpu.memory_space<vmem>>, %arg9: memref<1x128xf32, #tpu.memory_space<vmem>>, %arg10: memref<8x128xf32, #tpu.memory_space<vmem>>) attributes {dimension_semantics = [#tpu.dimension_semantics<parallel>], iteration_bounds = array<i64: 1>, scalar_prefetch = 0 : i64, scratch_operands = 0 : i64, tpu.core_type = #tpu.core_type<tc>, window_params = [{transform_indices = @transform_0, window_bounds = array<i64: 8, 16>}, {pipeline_mode = #tpu.pipeline_mode<synchronous>, transform_indices = @transform_1, window_bounds = array<i64: 16, 512>}, {pipeline_mode = #tpu.pipeline_mode<synchronous>, transform_indices = @transform_2, window_bounds = array<i64: 1, 512>}, {pipeline_mode = #tpu.pipeline_mode<synchronous>, transform_indices = @transform_3, window_bounds = array<i64: 512, 384>}, {pipeline_mode = #tpu.pipeline_mode<synchronous>, transform_indices = @transform_4, window_bounds = array<i64: 1, 384>}, {pipeline_mode = #tpu.pipeline_mode<synchronous>, transform_indices = @transform_5, window_bounds = array<i64: 384, 128>}, {pipeline_mode = #tpu.pipeline_mode<synchronous>, transform_indices = @transform_6, window_bounds = array<i64: 1, 128>}, {pipeline_mode = #tpu.pipeline_mode<synchronous>, transform_indices = @transform_7, window_bounds = array<i64: 1, 128>}, {pipeline_mode = #tpu.pipeline_mode<synchronous>, transform_indices = @transform_8, window_bounds = array<i64: 1, 128>}, {transform_indices = @transform_9, window_bounds = array<i64: 8, 128>}]} {
    %c0 = arith.constant 0 : index
    %c0_0 = arith.constant 0 : index
    %0 = vector.load %arg1[%c0, %c0_0] : memref<8x16xf32, #tpu.memory_space<vmem>>, vector<8x16xf32>
    %1 = arith.truncf %0 : vector<8x16xf32> to vector<8x16xbf16>
    %c0_1 = arith.constant 0 : index
    %c0_2 = arith.constant 0 : index
    %2 = vector.load %arg2[%c0_1, %c0_2] : memref<16x512xbf16, #tpu.memory_space<vmem>>, vector<16x512xbf16>
    %cst = arith.constant dense<0.000000e+00> : vector<8x512xf32>
    %3 = tpu.matmul %1, %2, %cst {dimension_numbers = #tpu.dot_dimension_numbers<[1], [0], [0], [1], [0, 0, 1, 1], [], []>} : vector<8x16xbf16>, vector<16x512xbf16>, vector<8x512xf32> -> vector<8x512xf32>
    %c0_3 = arith.constant 0 : index
    %c0_4 = arith.constant 0 : index
    %4 = vector.load %arg3[%c0_3, %c0_4] : memref<1x512xf32, #tpu.memory_space<vmem>>, vector<1x512xf32>
    %5 = vector.broadcast %4 : vector<1x512xf32> to vector<8x512xf32>
    %6 = arith.addf %3, %5 : vector<8x512xf32>
    %cst_5 = arith.constant 0.000000e+00 : f32
    %7 = vector.broadcast %cst_5 : f32 to vector<8x512xf32>
    %8 = arith.maximumf %6, %7 : vector<8x512xf32>
    %9 = arith.truncf %8 : vector<8x512xf32> to vector<8x512xbf16>
    %c0_6 = arith.constant 0 : index
    %c0_7 = arith.constant 0 : index
    %10 = vector.load %arg4[%c0_6, %c0_7] : memref<512x384xbf16, #tpu.memory_space<vmem>>, vector<512x384xbf16>
    %cst_8 = arith.constant dense<0.000000e+00> : vector<8x384xf32>
    %11 = tpu.matmul %9, %10, %cst_8 {dimension_numbers = #tpu.dot_dimension_numbers<[1], [0], [0], [1], [0, 0, 1, 1], [], []>} : vector<8x512xbf16>, vector<512x384xbf16>, vector<8x384xf32> -> vector<8x384xf32>
    %c0_9 = arith.constant 0 : index
    %c0_10 = arith.constant 0 : index
    %12 = vector.load %arg5[%c0_9, %c0_10] : memref<1x384xf32, #tpu.memory_space<vmem>>, vector<1x384xf32>
    %13 = vector.broadcast %12 : vector<1x384xf32> to vector<8x384xf32>
    %14 = arith.addf %11, %13 : vector<8x384xf32>
    %cst_11 = arith.constant 0.000000e+00 : f32
    %15 = vector.broadcast %cst_11 : f32 to vector<8x384xf32>
    %16 = arith.maximumf %14, %15 : vector<8x384xf32>
    %17 = arith.truncf %16 : vector<8x384xf32> to vector<8x384xbf16>
    %c0_12 = arith.constant 0 : index
    %c0_13 = arith.constant 0 : index
    %18 = vector.load %arg6[%c0_12, %c0_13] : memref<384x128xbf16, #tpu.memory_space<vmem>>, vector<384x128xbf16>
    %cst_14 = arith.constant dense<0.000000e+00> : vector<8x128xf32>
    %19 = tpu.matmul %17, %18, %cst_14 {dimension_numbers = #tpu.dot_dimension_numbers<[1], [0], [0], [1], [0, 0, 1, 1], [], []>} : vector<8x384xbf16>, vector<384x128xbf16>, vector<8x128xf32> -> vector<8x128xf32>
    %c0_15 = arith.constant 0 : index
    %c0_16 = arith.constant 0 : index
    %20 = vector.load %arg7[%c0_15, %c0_16] : memref<1x128xf32, #tpu.memory_space<vmem>>, vector<1x128xf32>
    %21 = vector.broadcast %20 : vector<1x128xf32> to vector<8x128xf32>
    %22 = arith.addf %19, %21 : vector<8x128xf32>
    %23 = math.tanh %22 : vector<8x128xf32>
    %c0_17 = arith.constant 0 : index
    %c0_18 = arith.constant 0 : index
    %24 = vector.load %arg8[%c0_17, %c0_18] : memref<1x128xf32, #tpu.memory_space<vmem>>, vector<1x128xf32>
    %25 = vector.broadcast %24 : vector<1x128xf32> to vector<8x128xf32>
    %26 = arith.mulf %23, %25 : vector<8x128xf32>
    %c0_19 = arith.constant 0 : index
    %c0_20 = arith.constant 0 : index
    %27 = vector.load %arg9[%c0_19, %c0_20] : memref<1x128xf32, #tpu.memory_space<vmem>>, vector<1x128xf32>
    %28 = vector.broadcast %27 : vector<1x128xf32> to vector<8x128xf32>
    %29 = arith.addf %26, %28 : vector<8x128xf32>
    %c0_21 = arith.constant 0 : index
    %c0_22 = arith.constant 0 : index
    %30 = vector.load %arg10[%c0_21, %c0_22] : memref<8x128xf32, #tpu.memory_space<vmem>>, vector<8x128xf32>
    tpu.vector_store %arg10[%c0_21, %c0_22], %29 {strides = array<i32>} : memref<8x128xf32, #tpu.memory_space<vmem>>, vector<8x128xf32>,
    return
  }
  func.func @transform_0(%arg0: i32) -> (i32, i32) {
    %c0_i32 = arith.constant 0 : i32
    %c0_i32_0 = arith.constant 0 : i32
    return %arg0, %c0_i32 : i32, i32
  }
  func.func @transform_1(%arg0: i32) -> (i32, i32) {
    %c0_i32 = arith.constant 0 : i32
    %c0_i32_0 = arith.constant 0 : i32
    %c0_i32_1 = arith.constant 0 : i32
    return %c0_i32, %c0_i32_0 : i32, i32
  }
  func.func @transform_2(%arg0: i32) -> (i32, i32) {
    %c0_i32 = arith.constant 0 : i32
    %c0_i32_0 = arith.constant 0 : i32
    %c0_i32_1 = arith.constant 0 : i32
    return %c0_i32, %c0_i32_0 : i32, i32
  }
  func.func @transform_3(%arg0: i32) -> (i32, i32) {
    %c0_i32 = arith.constant 0 : i32
    %c0_i32_0 = arith.constant 0 : i32
    %c0_i32_1 = arith.constant 0 : i32
    return %c0_i32, %c0_i32_0 : i32, i32
  }
  func.func @transform_4(%arg0: i32) -> (i32, i32) {
    %c0_i32 = arith.constant 0 : i32
    %c0_i32_0 = arith.constant 0 : i32
    %c0_i32_1 = arith.constant 0 : i32
    return %c0_i32, %c0_i32_0 : i32, i32
  }
  func.func @transform_5(%arg0: i32) -> (i32, i32) {
    %c0_i32 = arith.constant 0 : i32
    %c0_i32_0 = arith.constant 0 : i32
    %c0_i32_1 = arith.constant 0 : i32
    return %c0_i32, %c0_i32_0 : i32, i32
  }
  func.func @transform_6(%arg0: i32) -> (i32, i32) {
    %c0_i32 = arith.constant 0 : i32
    %c0_i32_0 = arith.constant 0 : i32
    %c0_i32_1 = arith.constant 0 : i32
    return %c0_i32, %c0_i32_0 : i32, i32
  }
  func.func @transform_7(%arg0: i32) -> (i32, i32) {
    %c0_i32 = arith.constant 0 : i32
    %c0_i32_0 = arith.constant 0 : i32
    %c0_i32_1 = arith.constant 0 : i32
    return %c0_i32, %c0_i32_0 : i32, i32
  }
  func.func @transform_8(%arg0: i32) -> (i32, i32) {
    %c0_i32 = arith.constant 0 : i32
    %c0_i32_0 = arith.constant 0 : i32
    %c0_i32_1 = arith.constant 0 : i32
    return %c0_i32, %c0_i32_0 : i32, i32
  }
  func.func @transform_9(%arg0: i32) -> (i32, i32) {
    %c0_i32 = arith.constant 0 : i32
    %c0_i32_0 = arith.constant 0 : i32
    return %arg0, %c0_i32 : i32, i32
  }
}

</mosaic_0001>

<llo_original>
// kernel: tpu_custom_call.1
$region0: #{tpu_custom_call.1}
  #allocation0 [shape = 'u32[]', space=smem, size = 0x4, offset = 0x4, fixed_abs, tag = 'smem constant byte address 0x4 - core index']
  #allocation1 [shape = 'u32[72,128]{1,0:T(1,128)}', space=vmem, size = 0x9000, scoped, tag = 'internal scratch']
  %s0 = inlined_call_operand.hbm [shape: f32[8,16], index: 0, kind: input, shape index: {}]
  %s1 = inlined_call_operand.hbm [shape: bf16[16,512], index: 1, kind: input, shape index: {}]
  %s2 = inlined_call_operand.hbm [shape: f32[1,512], index: 2, kind: input, shape index: {}]
  %s3 = inlined_call_operand.hbm [shape: bf16[512,384], index: 3, kind: input, shape index: {}]
  %s4 = inlined_call_operand.vmem [shape: f32[1,384], index: 4, kind: input, shape index: {}]
  %s5 = inlined_call_operand.hbm [shape: bf16[384,128], index: 5, kind: input, shape index: {}]
  %s6 = inlined_call_operand.vmem [shape: f32[1,128], index: 6, kind: input, shape index: {}]
  %s7 = inlined_call_operand.vmem [shape: f32[1,128], index: 7, kind: input, shape index: {}]
  %s8 = inlined_call_operand.vmem [shape: f32[1,128], index: 8, kind: input, shape index: {}]
  %s9 = inlined_call_operand.hbm [shape: f32[8,128], index: 9, kind: output, shape index: {}]
  %s10 = sld [smem:[#allocation0]]
  $region66: #{tpu_custom_call.1} parent=0
    _
  %s12 = ssub.s32 1, %s10
  %s13 = scalar_select 0, %s12, %s10
  $region1: #{tpu_custom_call.1} parent=0
    #allocation2 [shape = 'u8[4096]{0}', space=vmem, size = 0x1000, scoped, tag = 'input window, operand 0, single buffered']
    #allocation3 [shape = 's32[1]{0}', space=sflag, size = 0x4, scoped, tag = 'scoped memory for tpu_custom_call.1']
    #allocation4 [shape = 's32[1]{0}', space=sflag, size = 0x4, scoped, tag = 'scoped memory for tpu_custom_call.1']
    #allocation5 [shape = 'u8[16384]{0}', space=vmem, size = 0x4000, scoped, tag = 'input window, operand 1, single buffered']
    #allocation6 [shape = 's32[1]{0}', space=sflag, size = 0x4, scoped, tag = 'scoped memory for tpu_custom_call.1']
    #allocation7 [shape = 'u8[2048]{0}', space=vmem, size = 0x800, scoped, tag = 'input window, operand 2, single buffered']
    #allocation8 [shape = 'u8[393216]{0}', space=vmem, size = 0x60000, scoped, tag = 'input window, operand 3, single buffered']
    #allocation9 [shape = 's32[1]{0}', space=sflag, size = 0x4, scoped, tag = 'scoped memory for tpu_custom_call.1']
    #allocation10 [shape = 'u8[98304]{0}', space=vmem, size = 0x18000, scoped, tag = 'input window, operand 5, single buffered']
    #allocation11 [shape = 'u8[4096]{0}', space=vmem, size = 0x1000, scoped, tag = 'output window, operand 0, single buffered']
    %14 = vsyncpa [#allocation3], 0
    %15 = vsyncpa [#allocation6], 0
    %16 = vsyncpa [#allocation9], 0
    %17 = vsyncpa [#allocation4], 0
    // Predicated region
    $region2: #{tpu_custom_call.1} parent=1 // pred_check
      _
    $region3: #{tpu_custom_call.1} parent=1 // pred_check_branch
      %19 = sbr.rel (0) target = $region5
    $region4: #{tpu_custom_call.1} parent=1 // pred_region
      %21 = vsyncadd [#allocation3], 0
      %s23 = sshll.u32 %s0, 4
      %s24 = int_to_ptr.hbm [resolvable:$true] %s23
      %s25 = sshll.u32 [#allocation2], 4
      %s26 = int_to_ptr.vmem [resolvable:$true] %s25
      %28 = dma.hbm_to_vmem [thread:$0]  %s24, 128, %s26, [#allocation3]
    $region5: #{tpu_custom_call.1} parent=1 // pred_fallthru
      _
    // Predicated region
    $region6: #{tpu_custom_call.1} parent=1 // pred_check
      _
    $region7: #{tpu_custom_call.1} parent=1 // pred_check_branch
      %30 = sbr.rel (0) target = $region9
    $region8: #{tpu_custom_call.1} parent=1 // pred_region
      %32 = vsyncadd [#allocation6], 0
      %s33 = sshll.u32 %s1, 4
      %s34 = int_to_ptr.hbm [resolvable:$true] %s33
      %s35 = sshll.u32 [#allocation5], 4
      %s36 = int_to_ptr.vmem [resolvable:$true] %s35
      %41 = dma.hbm_to_vmem [thread:$0]  %s34, 512, %s36, [#allocation6], 256, 256, 16
    $region9: #{tpu_custom_call.1} parent=1 // pred_fallthru
      _
    // Predicated region
    $region10: #{tpu_custom_call.1} parent=1 // pred_check
      _
    $region11: #{tpu_custom_call.1} parent=1 // pred_check_branch
      %43 = sbr.rel (0) target = $region13
    $region12: #{tpu_custom_call.1} parent=1 // pred_region
      %45 = vsyncadd [#allocation6], 0
      %s47 = sshll.u32 %s2, 4
      %s48 = int_to_ptr.hbm [resolvable:$true] %s47
      %s49 = sshll.u32 [#allocation7], 4
      %s50 = int_to_ptr.vmem [resolvable:$true] %s49
      %52 = dma.hbm_to_vmem [thread:$0]  %s48, 64, %s50, [#allocation6]
    $region13: #{tpu_custom_call.1} parent=1 // pred_fallthru
      _
    // Predicated region
    $region14: #{tpu_custom_call.1} parent=1 // pred_check
      _
    $region15: #{tpu_custom_call.1} parent=1 // pred_check_branch
      %54 = sbr.rel (0) target = $region17
    $region16: #{tpu_custom_call.1} parent=1 // pred_region
      %56 = vsyncadd [#allocation9], 0
      %s57 = sshll.u32 %s3, 4
      %s58 = int_to_ptr.hbm [resolvable:$true] %s57
      %s59 = sshll.u32 [#allocation8], 4
      %s60 = int_to_ptr.vmem [resolvable:$true] %s59
      %65 = dma.hbm_to_vmem [thread:$0]  %s58, 12288, %s60, [#allocation9], 192, 192, 12
    $region17: #{tpu_custom_call.1} parent=1 // pred_fallthru
      _
    // Predicated region
    $region18: #{tpu_custom_call.1} parent=1 // pred_check
      _
    $region19: #{tpu_custom_call.1} parent=1 // pred_check_branch
      %67 = sbr.rel (0) target = $region21
    $region20: #{tpu_custom_call.1} parent=1 // pred_region
      _
    $region21: #{tpu_custom_call.1} parent=1 // pred_fallthru
      _
    // Predicated region
    $region22: #{tpu_custom_call.1} parent=1 // pred_check
      _
    $region23: #{tpu_custom_call.1} parent=1 // pred_check_branch
      %69 = sbr.rel (0) target = $region25
    $region24: #{tpu_custom_call.1} parent=1 // pred_region
      %71 = vsyncadd [#allocation9], 0
      %s72 = sshll.u32 %s5, 4
      %s73 = int_to_ptr.hbm [resolvable:$true] %s72
      %s74 = sshll.u32 [#allocation10], 4
      %s75 = int_to_ptr.vmem [resolvable:$true] %s74
      %80 = dma.hbm_to_vmem [thread:$0]  %s73, 3072, %s75, [#allocation9], 64, 64, 4
    $region25: #{tpu_custom_call.1} parent=1 // pred_fallthru
      _
    // Predicated region
    $region26: #{tpu_custom_call.1} parent=1 // pred_check
      _
    $region27: #{tpu_custom_call.1} parent=1 // pred_check_branch
      %82 = sbr.rel (0) target = $region29
    $region28: #{tpu_custom_call.1} parent=1 // pred_region
      _
    $region29: #{tpu_custom_call.1} parent=1 // pred_fallthru
      _
    // Predicated region
    $region30: #{tpu_custom_call.1} parent=1 // pred_check
      _
    $region31: #{tpu_custom_call.1} parent=1 // pred_check_branch
      %84 = sbr.rel (0) target = $region33
    $region32: #{tpu_custom_call.1} parent=1 // pred_region
      _
    $region33: #{tpu_custom_call.1} parent=1 // pred_fallthru
      _
    // Predicated region
    $region34: #{tpu_custom_call.1} parent=1 // pred_check
      _
    $region35: #{tpu_custom_call.1} parent=1 // pred_check_branch
      %86 = sbr.rel (0) target = $region37
    $region36: #{tpu_custom_call.1} parent=1 // pred_region
      _
    $region37: #{tpu_custom_call.1} parent=1 // pred_fallthru
      _
    // Predicated region
    $region38: #{tpu_custom_call.1} parent=1 // pred_check
      _
    $region39: #{tpu_custom_call.1} parent=1 // pred_check_branch
      %88 = sbr.rel (0) target = $region41
    $region40: #{tpu_custom_call.1} parent=1 // pred_region
      %90 = dma.done [#allocation3], 128
    $region41: #{tpu_custom_call.1} parent=1 // pred_fallthru
      _
    // Predicated region
    $region42: #{tpu_custom_call.1} parent=1 // pred_check
      _
    $region43: #{tpu_custom_call.1} parent=1 // pred_check_branch
      %92 = sbr.rel (0) target = $region45
    $region44: #{tpu_custom_call.1} parent=1 // pred_region
      %94 = dma.done [#allocation6], 512
    $region45: #{tpu_custom_call.1} parent=1 // pred_fallthru
      _
    // Predicated region
    $region46: #{tpu_custom_call.1} parent=1 // pred_check
      _
    $region47: #{tpu_custom_call.1} parent=1 // pred_check_branch
      %96 = sbr.rel (0) target = $region49
    $region48: #{tpu_custom_call.1} parent=1 // pred_region
      %98 = dma.done [#allocation6], 64
    $region49: #{tpu_custom_call.1} parent=1 // pred_fallthru
      _
    // Predicated region
    $region50: #{tpu_custom_call.1} parent=1 // pred_check
      _
    $region51: #{tpu_custom_call.1} parent=1 // pred_check_branch
      %100 = sbr.rel (0) target = $region53
    $region52: #{tpu_custom_call.1} parent=1 // pred_region
      %102 = dma.done [#allocation9], 12288
    $region53: #{tpu_custom_call.1} parent=1 // pred_fallthru
      _
    // Predicated region
    $region54: #{tpu_custom_call.1} parent=1 // pred_check
      _
    $region55: #{tpu_custom_call.1} parent=1 // pred_check_branch
      %104 = sbr.rel (0) target = $region57
    $region56: #{tpu_custom_call.1} parent=1 // pred_region
      %106 = dma.done [#allocation9], 3072
    $region57: #{tpu_custom_call.1} parent=1 // pred_fallthru
      _
    %v108 = vld [vmem:[#allocation2] sm:$0xff]
    %v109 = vpack.c.bf16 %v108, %v108
    %v110 = vld [vmem:[#allocation5] sm:$0xff]
    %v111 = vld [vmem:[#allocation5 + $0x8] sm:$0xff]
    %v112 = vld [vmem:[#allocation5 + $0x10] sm:$0xff]
    %v113 = vld [vmem:[#allocation5 + $0x18] sm:$0xff]
    %v114 = vld [vmem:[#allocation7] sm:$0xf]
    %v116 = vperm.slane %v114, 0
    %v117 = vperm.slane %v114, 1
    %v118 = vperm.slane %v114, 2
    %v119 = vperm.slane %v114, 3
    %v128 = vunpack.c.l.b16 %v110
    %v129 = vunpack.c.h.b16 %v110
    %v130 = vunpack.c.l.b16 %v111
    %v131 = vunpack.c.h.b16 %v111
    %v132 = vunpack.c.l.b16 %v112
    %v133 = vunpack.c.h.b16 %v112
    %v134 = vunpack.c.l.b16 %v113
    %v135 = vunpack.c.h.b16 %v113
    %v136 = vpack.c.b16 %v132, %v128
    %v137 = vpack.c.b16 %v133, %v129
    %v138 = vpack.c.b16 %v134, %v130
    %v139 = vpack.c.b16 %v135, %v131
    %vm144 = vcmask 130048
    %v146 = vsel %vm144, %v109, 0
    %148 = vmatpush.bf16.msra.mxu0 0
    %149 = vmatpush.bf16.msra.mxu0 0
    %150 = vmatpush.bf16.msra.mxu0 0
    %151 = vmatpush.bf16.msra.mxu0 0
    %152 = vmatpush.bf16.msra.mxu0 0
    %153 = vmatpush.bf16.msra.mxu0 0
    %154 = vmatpush.bf16.msra.mxu0 0
    %155 = vmatpush.bf16.msra.mxu0 %v136
    %156 = vmatmul.bf16.gmra.mxu0 %v146
    %v157 = vpop.f32.mrf.mxu0
    %v158 = vadd.f32 %v116, %v157
    %v159 = vpop.f32.mrf.mxu0
    %160 = vdwg.mxu0
    %161 = vmatpush.bf16.msra.mxu0 0
    %162 = vmatpush.bf16.msra.mxu0 0
    %163 = vmatpush.bf16.msra.mxu0 0
    %164 = vmatpush.bf16.msra.mxu0 0
    %165 = vmatpush.bf16.msra.mxu0 0
    %166 = vmatpush.bf16.msra.mxu0 0
    %167 = vmatpush.bf16.msra.mxu0 0
    %168 = vmatpush.bf16.msra.mxu0 %v137
    %169 = vmatmul.bf16.gmra.mxu0 %v146
    %v170 = vpop.f32.mrf.mxu0
    %v171 = vadd.f32 %v117, %v170
    %v172 = vpop.f32.mrf.mxu0
    %173 = vdwg.mxu0
    %174 = vmatpush.bf16.msra.mxu0 0
    %175 = vmatpush.bf16.msra.mxu0 0
    %176 = vmatpush.bf16.msra.mxu0 0
    %177 = vmatpush.bf16.msra.mxu0 0
    %178 = vmatpush.bf16.msra.mxu0 0
    %179 = vmatpush.bf16.msra.mxu0 0
    %180 = vmatpush.bf16.msra.mxu0 0
    %181 = vmatpush.bf16.msra.mxu0 %v138
    %182 = vmatmul.bf16.gmra.mxu0 %v146
    %v183 = vpop.f32.mrf.mxu0
    %v184 = vadd.f32 %v118, %v183
    %v185 = vpop.f32.mrf.mxu0
    %186 = vdwg.mxu0
    %187 = vmatpush.bf16.msra.mxu0 0
    %188 = vmatpush.bf16.msra.mxu0 0
    %189 = vmatpush.bf16.msra.mxu0 0
    %190 = vmatpush.bf16.msra.mxu0 0
    %191 = vmatpush.bf16.msra.mxu0 0
    %192 = vmatpush.bf16.msra.mxu0 0
    %193 = vmatpush.bf16.msra.mxu0 0
    %194 = vmatpush.bf16.msra.mxu0 %v139
    %195 = vmatmul.bf16.gmra.mxu0 %v146
    %v196 = vpop.f32.mrf.mxu0
    %v197 = vadd.f32 %v119, %v196
    %v198 = vpop.f32.mrf.mxu0
    %199 = vdwg.mxu0
    %v200 = vmax.f32 %v158, 0.0
    %v201 = vmax.f32 %v171, 0.0
    %v202 = vmax.f32 %v184, 0.0
    %v203 = vmax.f32 %v197, 0.0
    %v204 = vpack.c.bf16 %v200, %v200
    %v205 = vpack.c.bf16 %v201, %v201
    %v206 = vpack.c.bf16 %v202, %v202
    %v207 = vpack.c.bf16 %v203, %v203
    %v208 = vld [vmem:[#allocation8] sm:$0xff]
    %v209 = vld [vmem:[#allocation8 + $0x8] sm:$0xf]
    %v210 = vld [vmem:[#allocation8 + $0xc] sm:$0xff]
    %v211 = vld [vmem:[#allocation8 + $0x14] sm:$0xf]
    %v212 = vld [vmem:[#allocation8 + $0x18] sm:$0xff]
    %v213 = vld [vmem:[#allocation8 + $0x20] sm:$0xf]
    %v214 = vld [vmem:[#allocation8 + $0x24] sm:$0xff]
    %v215 = vld [vmem:[#allocation8 + $0x2c] sm:$0xf]
    %v216 = vld [vmem:[#allocation8 + $0x30] sm:$0xff]
    %v217 = vld [vmem:[#allocation8 + $0x38] sm:$0xf]
    %v218 = vld [vmem:[#allocation8 + $0x3c] sm:$0xff]
    %v219 = vld [vmem:[#allocation8 + $0x44] sm:$0xf]
    %v220 = vld [vmem:[#allocation8 + $0x48] sm:$0xff]
    %v221 = vld [vmem:[#allocation8 + $0x50] sm:$0xf]
    %v222 = vld [vmem:[#allocation8 + $0x54] sm:$0xff]
    %v223 = vld [vmem:[#allocation8 + $0x5c] sm:$0xf]
    %v224 = vld [vmem:[#allocation8 + $0x60] sm:$0xff]
    %v225 = vld [vmem:[#allocation8 + $0x68] sm:$0xf]
    %v226 = vld [vmem:[#allocation8 + $0x6c] sm:$0xff]
    %v227 = vld [vmem:[#allocation8 + $0x74] sm:$0xf]
    %v228 = vld [vmem:[#allocation8 + $0x78] sm:$0xff]
    %v229 = vld [vmem:[#allocation8 + $0x80] sm:$0xf]
    %v230 = vld [vmem:[#allocation8 + $0x84] sm:$0xff]
    %v231 = vld [vmem:[#allocation8 + $0x8c] sm:$0xf]
    %v232 = vld [vmem:[#allocation8 + $0x90] sm:$0xff]
    %v233 = vld [vmem:[#allocation8 + $0x98] sm:$0xf]
    %v234 = vld [vmem:[#allocation8 + $0x9c] sm:$0xff]
    %v235 = vld [vmem:[#allocation8 + $0xa4] sm:$0xf]
    %v236 = vld [vmem:[#allocation8 + $0xa8] sm:$0xff]
    %v237 = vld [vmem:[#allocation8 + $0xb0] sm:$0xf]
    %v238 = vld [vmem:[#allocation8 + $0xb4] sm:$0xff]
    %v239 = vld [vmem:[#allocation8 + $0xbc] sm:$0xf]
    %v240 = vld [vmem:[#allocation8 + $0xc0] sm:$0xff]
    %v241 = vld [vmem:[#allocation8 + $0xc8] sm:$0xf]
    %v242 = vld [vmem:[#allocation8 + $0xcc] sm:$0xff]
    %v243 = vld [vmem:[#allocation8 + $0xd4] sm:$0xf]
    %v244 = vld [vmem:[#allocation8 + $0xd8] sm:$0xff]
    %v245 = vld [vmem:[#allocation8 + $0xe0] sm:$0xf]
    %v246 = vld [vmem:[#allocation8 + $0xe4] sm:$0xff]
    %v247 = vld [vmem:[#allocation8 + $0xec] sm:$0xf]
    %v248 = vld [vmem:[#allocation8 + $0xf0] sm:$0xff]
    %v249 = vld [vmem:[#allocation8 + $0xf8] sm:$0xf]
    %v250 = vld [vmem:[#allocation8 + $0xfc] sm:$0xff]
    %v251 = vld [vmem:[#allocation8 + $0x104] sm:$0xf]
    %v252 = vld [vmem:[#allocation8 + $0x108] sm:$0xff]
    %v253 = vld [vmem:[#allocation8 + $0x110] sm:$0xf]
    %v254 = vld [vmem:[#allocation8 + $0x114] sm:$0xff]
    %v255 = vld [vmem:[#allocation8 + $0x11c] sm:$0xf]
    %v256 = vld [vmem:[#allocation8 + $0x120] sm:$0xff]
    %v257 = vld [vmem:[#allocation8 + $0x128] sm:$0xf]
    %v258 = vld [vmem:[#allocation8 + $0x12c] sm:$0xff]
    %v259 = vld [vmem:[#allocation8 + $0x134] sm:$0xf]
    %v260 = vld [vmem:[#allocation8 + $0x138] sm:$0xff]
    %v261 = vld [vmem:[#allocation8 + $0x140] sm:$0xf]
    %v262 = vld [vmem:[#allocation8 + $0x144] sm:$0xff]
    %v263 = vld [vmem:[#allocation8 + $0x14c] sm:$0xf]
    %v264 = vld [vmem:[#allocation8 + $0x150] sm:$0xff]
    %v265 = vld [vmem:[#allocation8 + $0x158] sm:$0xf]
    %v266 = vld [vmem:[#allocation8 + $0x15c] sm:$0xff]
    %v267 = vld [vmem:[#allocation8 + $0x164] sm:$0xf]
    %v268 = vld [vmem:[#allocation8 + $0x168] sm:$0xff]
    %v269 = vld [vmem:[#allocation8 + $0x170] sm:$0xf]
    %v270 = vld [vmem:[#allocation8 + $0x174] sm:$0xff]
    %v271 = vld [vmem:[#allocation8 + $0x17c] sm:$0xf]
    %v272 = vld [vmem:[#allocation8 + $0x180] sm:$0xff]
    %v273 = vld [vmem:[#allocation8 + $0x188] sm:$0xf]
    %v274 = vld [vmem:[#allocation8 + $0x18c] sm:$0xff]
    %v275 = vld [vmem:[#allocation8 + $0x194] sm:$0xf]
    %v276 = vld [vmem:[#allocation8 + $0x198] sm:$0xff]
    %v277 = vld [vmem:[#allocation8 + $0x1a0] sm:$0xf]
    %v278 = vld [vmem:[#allocation8 + $0x1a4] sm:$0xff]
    %v279 = vld [vmem:[#allocation8 + $0x1ac] sm:$0xf]
    %v280 = vld [vmem:[#allocation8 + $0x1b0] sm:$0xff]
    %v281 = vld [vmem:[#allocation8 + $0x1b8] sm:$0xf]
    %v282 = vld [vmem:[#allocation8 + $0x1bc] sm:$0xff]
    %v283 = vld [vmem:[#allocation8 + $0x1c4] sm:$0xf]
    %v284 = vld [vmem:[#allocation8 + $0x1c8] sm:$0xff]
    %v285 = vld [vmem:[#allocation8 + $0x1d0] sm:$0xf]
    %v286 = vld [vmem:[#allocation8 + $0x1d4] sm:$0xff]
    %v287 = vld [vmem:[#allocation8 + $0x1dc] sm:$0xf]
    %v288 = vld [vmem:[#allocation8 + $0x1e0] sm:$0xff]
    %v289 = vld [vmem:[#allocation8 + $0x1e8] sm:$0xf]
    %v290 = vld [vmem:[#allocation8 + $0x1ec] sm:$0xff]
    %v291 = vld [vmem:[#allocation8 + $0x1f4] sm:$0xf]
    %v292 = vld [vmem:[#allocation8 + $0x1f8] sm:$0xff]
    %v293 = vld [vmem:[#allocation8 + $0x200] sm:$0xf]
    %v294 = vld [vmem:[#allocation8 + $0x204] sm:$0xff]
    %v295 = vld [vmem:[#allocation8 + $0x20c] sm:$0xf]
    %v296 = vld [vmem:[#allocation8 + $0x210] sm:$0xff]
    %v297 = vld [vmem:[#allocation8 + $0x218] sm:$0xf]
    %v298 = vld [vmem:[#allocation8 + $0x21c] sm:$0xff]
    %v299 = vld [vmem:[#allocation8 + $0x224] sm:$0xf]
    %v300 = vld [vmem:[#allocation8 + $0x228] sm:$0xff]
    %v301 = vld [vmem:[#allocation8 + $0x230] sm:$0xf]
    %v302 = vld [vmem:[#allocation8 + $0x234] sm:$0xff]
    %v303 = vld [vmem:[#allocation8 + $0x23c] sm:$0xf]
    %v304 = vld [vmem:[#allocation8 + $0x240] sm:$0xff]
    %v305 = vld [vmem:[#allocation8 + $0x248] sm:$0xf]
    %v306 = vld [vmem:[#allocation8 + $0x24c] sm:$0xff]
    %v307 = vld [vmem:[#allocation8 + $0x254] sm:$0xf]
    %v308 = vld [vmem:[#allocation8 + $0x258] sm:$0xff]
    %v309 = vld [vmem:[#allocation8 + $0x260] sm:$0xf]
    %v310 = vld [vmem:[#allocation8 + $0x264] sm:$0xff]
    %v311 = vld [vmem:[#allocation8 + $0x26c] sm:$0xf]
    %v312 = vld [vmem:[#allocation8 + $0x270] sm:$0xff]
    %v313 = vld [vmem:[#allocation8 + $0x278] sm:$0xf]
    %v314 = vld [vmem:[#allocation8 + $0x27c] sm:$0xff]
    %v315 = vld [vmem:[#allocation8 + $0x284] sm:$0xf]
    %v316 = vld [vmem:[#allocation8 + $0x288] sm:$0xff]
    %v317 = vld [vmem:[#allocation8 + $0x290] sm:$0xf]
    %v318 = vld [vmem:[#allocation8 + $0x294] sm:$0xff]
    %v319 = vld [vmem:[#allocation8 + $0x29c] sm:$0xf]
    %v320 = vld [vmem:[#allocation8 + $0x2a0] sm:$0xff]
    %v321 = vld [vmem:[#allocation8 + $0x2a8] sm:$0xf]
    %v322 = vld [vmem:[#allocation8 + $0x2ac] sm:$0xff]
    %v323 = vld [vmem:[#allocation8 + $0x2b4] sm:$0xf]
    %v324 = vld [vmem:[#allocation8 + $0x2b8] sm:$0xff]
    %v325 = vld [vmem:[#allocation8 + $0x2c0] sm:$0xf]
    %v326 = vld [vmem:[#allocation8 + $0x2c4] sm:$0xff]
    %v327 = vld [vmem:[#allocation8 + $0x2cc] sm:$0xf]
    %v328 = vld [vmem:[#allocation8 + $0x2d0] sm:$0xff]
    %v329 = vld [vmem:[#allocation8 + $0x2d8] sm:$0xf]
    %v330 = vld [vmem:[#allocation8 + $0x2dc] sm:$0xff]
    %v331 = vld [vmem:[#allocation8 + $0x2e4] sm:$0xf]
    %v332 = vld [vmem:[#allocation8 + $0x2e8] sm:$0xff]
    %v333 = vld [vmem:[#allocation8 + $0x2f0] sm:$0xf]
    %v334 = vld [vmem:[#allocation8 + $0x2f4] sm:$0xff]
    %v335 = vld [vmem:[#allocation8 + $0x2fc] sm:$0xf]
    %v336 = vld [vmem:[%s4] sm:$0x7]
    %v338 = vperm.slane %v336, 0
    %v339 = vperm.slane %v336, 1
    %v340 = vperm.slane %v336, 2
    %v472 = vunpack.c.l.b16 %v208
    %v473 = vunpack.c.h.b16 %v208
    %v474 = vunpack.c.l.b16 %v209
    %v475 = vunpack.c.l.b16 %v210
    %v476 = vunpack.c.h.b16 %v210
    %v477 = vunpack.c.l.b16 %v211
    %v478 = vunpack.c.l.b16 %v212
    %v479 = vunpack.c.h.b16 %v212
    %v480 = vunpack.c.l.b16 %v213
    %v481 = vunpack.c.l.b16 %v214
    %v482 = vunpack.c.h.b16 %v214
    %v483 = vunpack.c.l.b16 %v215
    %v484 = vunpack.c.l.b16 %v216
    %v485 = vunpack.c.h.b16 %v216
    %v486 = vunpack.c.l.b16 %v217
    %v487 = vunpack.c.l.b16 %v218
    %v488 = vunpack.c.h.b16 %v218
    %v489 = vunpack.c.l.b16 %v219
    %v490 = vunpack.c.l.b16 %v220
    %v491 = vunpack.c.h.b16 %v220
    %v492 = vunpack.c.l.b16 %v221
    %v493 = vunpack.c.l.b16 %v222
    %v494 = vunpack.c.h.b16 %v222
    %v495 = vunpack.c.l.b16 %v223
    %v496 = vunpack.c.l.b16 %v224
    %v497 = vunpack.c.h.b16 %v224
    %v498 = vunpack.c.l.b16 %v225
    %v499 = vunpack.c.l.b16 %v226
    %v500 = vunpack.c.h.b16 %v226
    %v501 = vunpack.c.l.b16 %v227
    %v502 = vunpack.c.l.b16 %v228
    %v503 = vunpack.c.h.b16 %v228
    %v504 = vunpack.c.l.b16 %v229
    %v505 = vunpack.c.l.b16 %v230
    %v506 = vunpack.c.h.b16 %v230
    %v507 = vunpack.c.l.b16 %v231
    %v508 = vunpack.c.l.b16 %v232
    %v509 = vunpack.c.h.b16 %v232
    %v510 = vunpack.c.l.b16 %v233
    %v511 = vunpack.c.l.b16 %v234
    %v512 = vunpack.c.h.b16 %v234
    %v513 = vunpack.c.l.b16 %v235
    %v514 = vunpack.c.l.b16 %v236
    %v515 = vunpack.c.h.b16 %v236
    %v516 = vunpack.c.l.b16 %v237
    %v517 = vunpack.c.l.b16 %v238
    %v518 = vunpack.c.h.b16 %v238
    %v519 = vunpack.c.l.b16 %v239
    %v520 = vunpack.c.l.b16 %v240
    %v521 = vunpack.c.h.b16 %v240
    %v522 = vunpack.c.l.b16 %v241
    %v523 = vunpack.c.l.b16 %v242
    %v524 = vunpack.c.h.b16 %v242
    %v525 = vunpack.c.l.b16 %v243
    %v526 = vunpack.c.l.b16 %v244
    %v527 = vunpack.c.h.b16 %v244
    %v528 = vunpack.c.l.b16 %v245
    %v529 = vunpack.c.l.b16 %v246
    %v530 = vunpack.c.h.b16 %v246
    %v531 = vunpack.c.l.b16 %v247
    %v532 = vunpack.c.l.b16 %v248
    %v533 = vunpack.c.h.b16 %v248
    %v534 = vunpack.c.l.b16 %v249
    %v535 = vunpack.c.l.b16 %v250
    %v536 = vunpack.c.h.b16 %v250
    %v537 = vunpack.c.l.b16 %v251
    %v538 = vunpack.c.l.b16 %v252
    %v539 = vunpack.c.h.b16 %v252
    %v540 = vunpack.c.l.b16 %v253
    %v541 = vunpack.c.l.b16 %v254
    %v542 = vunpack.c.h.b16 %v254
    %v543 = vunpack.c.l.b16 %v255
    %v544 = vunpack.c.l.b16 %v256
    %v545 = vunpack.c.h.b16 %v256
    %v546 = vunpack.c.l.b16 %v257
    %v547 = vunpack.c.l.b16 %v258
    %v548 = vunpack.c.h.b16 %v258
    %v549 = vunpack.c.l.b16 %v259
    %v550 = vunpack.c.l.b16 %v260
    %v551 = vunpack.c.h.b16 %v260
    %v552 = vunpack.c.l.b16 %v261
    %v553 = vunpack.c.l.b16 %v262
    %v554 = vunpack.c.h.b16 %v262
    %v555 = vunpack.c.l.b16 %v263
    %v556 = vunpack.c.l.b16 %v264
    %v557 = vunpack.c.h.b16 %v264
    %v558 = vunpack.c.l.b16 %v265
    %v559 = vunpack.c.l.b16 %v266
    %v560 = vunpack.c.h.b16 %v266
    %v561 = vunpack.c.l.b16 %v267
    %v562 = vunpack.c.l.b16 %v268
    %v563 = vunpack.c.h.b16 %v268
    %v564 = vunpack.c.l.b16 %v269
    %v565 = vunpack.c.l.b16 %v270
    %v566 = vunpack.c.h.b16 %v270
    %v567 = vunpack.c.l.b16 %v271
    %v568 = vunpack.c.l.b16 %v272
    %v569 = vunpack.c.h.b16 %v272
    %v570 = vunpack.c.l.b16 %v273
    %v571 = vunpack.c.l.b16 %v274
    %v572 = vunpack.c.h.b16 %v274
    %v573 = vunpack.c.l.b16 %v275
    %v574 = vunpack.c.l.b16 %v276
    %v575 = vunpack.c.h.b16 %v276
    %v576 = vunpack.c.l.b16 %v277
    %v577 = vunpack.c.l.b16 %v278
    %v578 = vunpack.c.h.b16 %v278
    %v579 = vunpack.c.l.b16 %v279
    %v580 = vunpack.c.l.b16 %v280
    %v581 = vunpack.c.h.b16 %v280
    %v582 = vunpack.c.l.b16 %v281
    %v583 = vunpack.c.l.b16 %v282
    %v584 = vunpack.c.h.b16 %v282
    %v585 = vunpack.c.l.b16 %v283
    %v586 = vunpack.c.l.b16 %v284
    %v587 = vunpack.c.h.b16 %v284
    %v588 = vunpack.c.l.b16 %v285
    %v589 = vunpack.c.l.b16 %v286
    %v590 = vunpack.c.h.b16 %v286
    %v591 = vunpack.c.l.b16 %v287
    %v592 = vunpack.c.l.b16 %v288
    %v593 = vunpack.c.h.b16 %v288
    %v594 = vunpack.c.l.b16 %v289
    %v595 = vunpack.c.l.b16 %v290
    %v596 = vunpack.c.h.b16 %v290
    %v597 = vunpack.c.l.b16 %v291
    %v598 = vunpack.c.l.b16 %v292
    %v599 = vunpack.c.h.b16 %v292
    %v600 = vunpack.c.l.b16 %v293
    %v601 = vunpack.c.l.b16 %v294
    %v602 = vunpack.c.h.b16 %v294
    %v603 = vunpack.c.l.b16 %v295
    %v604 = vunpack.c.l.b16 %v296
    %v605 = vunpack.c.h.b16 %v296
    %v606 = vunpack.c.l.b16 %v297
    %v607 = vunpack.c.l.b16 %v298
    %v608 = vunpack.c.h.b16 %v298
    %v609 = vunpack.c.l.b16 %v299
    %v610 = vunpack.c.l.b16 %v300
    %v611 = vunpack.c.h.b16 %v300
    %v612 = vunpack.c.l.b16 %v301
    %v613 = vunpack.c.l.b16 %v302
    %v614 = vunpack.c.h.b16 %v302
    %v615 = vunpack.c.l.b16 %v303
    %v616 = vunpack.c.l.b16 %v304
    %v617 = vunpack.c.h.b16 %v304
    %v618 = vunpack.c.l.b16 %v305
    %v619 = vunpack.c.l.b16 %v306
    %v620 = vunpack.c.h.b16 %v306
    %v621 = vunpack.c.l.b16 %v307
    %v622 = vunpack.c.l.b16 %v308
    %v623 = vunpack.c.h.b16 %v308
    %v624 = vunpack.c.l.b16 %v309
    %v625 = vunpack.c.l.b16 %v310
    %v626 = vunpack.c.h.b16 %v310
    %v627 = vunpack.c.l.b16 %v311
    %v628 = vunpack.c.l.b16 %v312
    %v629 = vunpack.c.h.b16 %v312
    %v630 = vunpack.c.l.b16 %v313
    %v631 = vunpack.c.l.b16 %v314
    %v632 = vunpack.c.h.b16 %v314
    %v633 = vunpack.c.l.b16 %v315
    %v634 = vunpack.c.l.b16 %v316
    %v635 = vunpack.c.h.b16 %v316
    %v636 = vunpack.c.l.b16 %v317
    %v637 = vunpack.c.l.b16 %v318
    %v638 = vunpack.c.h.b16 %v318
    %v639 = vunpack.c.l.b16 %v319
    %v640 = vunpack.c.l.b16 %v320
    %v641 = vunpack.c.h.b16 %v320
    %v642 = vunpack.c.l.b16 %v321
    %v643 = vunpack.c.l.b16 %v322
    %v644 = vunpack.c.h.b16 %v322
    %v645 = vunpack.c.l.b16 %v323
    %v646 = vunpack.c.l.b16 %v324
    %v647 = vunpack.c.h.b16 %v324
    %v648 = vunpack.c.l.b16 %v325
    %v649 = vunpack.c.l.b16 %v326
    %v650 = vunpack.c.h.b16 %v326
    %v651 = vunpack.c.l.b16 %v327
    %v652 = vunpack.c.l.b16 %v328
    %v653 = vunpack.c.h.b16 %v328
    %v654 = vunpack.c.l.b16 %v329
    %v655 = vunpack.c.l.b16 %v330
    %v656 = vunpack.c.h.b16 %v330
    %v657 = vunpack.c.l.b16 %v331
    %v658 = vunpack.c.l.b16 %v332
    %v659 = vunpack.c.h.b16 %v332
    %v660 = vunpack.c.l.b16 %v333
    %v661 = vunpack.c.l.b16 %v334
    %v662 = vunpack.c.h.b16 %v334
    %v663 = vunpack.c.l.b16 %v335
    %v664 = vpack.c.b16 %v475, %v472
    %v665 = vpack.c.b16 %v476, %v473
    %v666 = vpack.c.b16 %v477, %v474
    %v667 = vpack.c.b16 %v481, %v478
    %v668 = vpack.c.b16 %v482, %v479
    %v669 = vpack.c.b16 %v483, %v480
    %v670 = vpack.c.b16 %v487, %v484
    %v671 = vpack.c.b16 %v488, %v485
    %v672 = vpack.c.b16 %v489, %v486
    %v673 = vpack.c.b16 %v493, %v490
    %v674 = vpack.c.b16 %v494, %v491
    %v675 = vpack.c.b16 %v495, %v492
    %v676 = vpack.c.b16 %v499, %v496
    %v677 = vpack.c.b16 %v500, %v497
    %v678 = vpack.c.b16 %v501, %v498
    %v679 = vpack.c.b16 %v505, %v502
    %v680 = vpack.c.b16 %v506, %v503
    %v681 = vpack.c.b16 %v507, %v504
    %v682 = vpack.c.b16 %v511, %v508
    %v683 = vpack.c.b16 %v512, %v509
    %v684 = vpack.c.b16 %v513, %v510
    %v685 = vpack.c.b16 %v517, %v514
    %v686 = vpack.c.b16 %v518, %v515
    %v687 = vpack.c.b16 %v519, %v516
    %v688 = vpack.c.b16 %v523, %v520
    %v689 = vpack.c.b16 %v524, %v521
    %v690 = vpack.c.b16 %v525, %v522
    %v691 = vpack.c.b16 %v529, %v526
    %v692 = vpack.c.b16 %v530, %v527
    %v693 = vpack.c.b16 %v531, %v528
    %v694 = vpack.c.b16 %v535, %v532
    %v695 = vpack.c.b16 %v536, %v533
    %v696 = vpack.c.b16 %v537, %v534
    %v697 = vpack.c.b16 %v541, %v538
    %v698 = vpack.c.b16 %v542, %v539
    %v699 = vpack.c.b16 %v543, %v540
    %v700 = vpack.c.b16 %v547, %v544
    %v701 = vpack.c.b16 %v548, %v545
    %v702 = vpack.c.b16 %v549, %v546
    %v703 = vpack.c.b16 %v553, %v550
    %v704 = vpack.c.b16 %v554, %v551
    %v705 = vpack.c.b16 %v555, %v552
    %v706 = vpack.c.b16 %v559, %v556
    %v707 = vpack.c.b16 %v560, %v557
    %v708 = vpack.c.b16 %v561, %v558
    %v709 = vpack.c.b16 %v565, %v562
    %v710 = vpack.c.b16 %v566, %v563
    %v711 = vpack.c.b16 %v567, %v564
    %v712 = vpack.c.b16 %v571, %v568
    %v713 = vpack.c.b16 %v572, %v569
    %v714 = vpack.c.b16 %v573, %v570
    %v715 = vpack.c.b16 %v577, %v574
    %v716 = vpack.c.b16 %v578, %v575
    %v717 = vpack.c.b16 %v579, %v576
    %v718 = vpack.c.b16 %v583, %v580
    %v719 = vpack.c.b16 %v584, %v581
    %v720 = vpack.c.b16 %v585, %v582
    %v721 = vpack.c.b16 %v589, %v586
    %v722 = vpack.c.b16 %v590, %v587
    %v723 = vpack.c.b16 %v591, %v588
    %v724 = vpack.c.b16 %v595, %v592
    %v725 = vpack.c.b16 %v596, %v593
    %v726 = vpack.c.b16 %v597, %v594
    %v727 = vpack.c.b16 %v601, %v598
    %v728 = vpack.c.b16 %v602, %v599
    %v729 = vpack.c.b16 %v603, %v600
    %v730 = vpack.c.b16 %v607, %v604
    %v731 = vpack.c.b16 %v608, %v605
    %v732 = vpack.c.b16 %v609, %v606
    %v733 = vpack.c.b16 %v613, %v610
    %v734 = vpack.c.b16 %v614, %v611
    %v735 = vpack.c.b16 %v615, %v612
    %v736 = vpack.c.b16 %v619, %v616
    %v737 = vpack.c.b16 %v620, %v617
    %v738 = vpack.c.b16 %v621, %v618
    %v739 = vpack.c.b16 %v625, %v622
    %v740 = vpack.c.b16 %v626, %v623
    %v741 = vpack.c.b16 %v627, %v624
    %v742 = vpack.c.b16 %v631, %v628
    %v743 = vpack.c.b16 %v632, %v629
    %v744 = vpack.c.b16 %v633, %v630
    %v745 = vpack.c.b16 %v637, %v634
    %v746 = vpack.c.b16 %v638, %v635
    %v747 = vpack.c.b16 %v639, %v636
    %v748 = vpack.c.b16 %v643, %v640
    %v749 = vpack.c.b16 %v644, %v641
    %v750 = vpack.c.b16 %v645, %v642
    %v751 = vpack.c.b16 %v649, %v646
    %v752 = vpack.c.b16 %v650, %v647
    %v753 = vpack.c.b16 %v651, %v648
    %v754 = vpack.c.b16 %v655, %v652
    %v755 = vpack.c.b16 %v656, %v653
    %v756 = vpack.c.b16 %v657, %v654
    %v757 = vpack.c.b16 %v661, %v658
    %v758 = vpack.c.b16 %v662, %v659
    %v759 = vpack.c.b16 %v663, %v660
    %856 = vmatpush.bf16.msra.mxu0 %v685
    %857 = vmatpush.bf16.msra.mxu0 %v682
    %858 = vmatpush.bf16.msra.mxu0 %v679
    %859 = vmatpush.bf16.msra.mxu0 %v676
    %860 = vmatpush.bf16.msra.mxu0 %v673
    %861 = vmatpush.bf16.msra.mxu0 %v670
    %862 = vmatpush.bf16.msra.mxu0 %v667
    %863 = vmatpush.bf16.msra.mxu0 %v664
    %864 = vmatmul.bf16.gmra.mxu0 %v204
    %v865 = vpop.f32.mrf.mxu0
    %v866 = vadd.f32 %v338, %v865
    %v867 = vpop.f32.mrf.mxu0
    %868 = vdwg.mxu0
    %869 = vmatpush.bf16.msra.mxu0 %v709
    %870 = vmatpush.bf16.msra.mxu0 %v706
    %871 = vmatpush.bf16.msra.mxu0 %v703
    %872 = vmatpush.bf16.msra.mxu0 %v700
    %873 = vmatpush.bf16.msra.mxu0 %v697
    %874 = vmatpush.bf16.msra.mxu0 %v694
    %875 = vmatpush.bf16.msra.mxu0 %v691
    %876 = vmatpush.bf16.msra.mxu0 %v688
    %877 = vmatmul.bf16.gmra.mxu0 %v205
    %v878 = vpop.f32.mrf.mxu0
    %v879 = vadd.f32 %v866, %v878
    %v880 = vpop.f32.mrf.mxu0
    %881 = vdwg.mxu0
    %882 = vmatpush.bf16.msra.mxu0 %v733
    %883 = vmatpush.bf16.msra.mxu0 %v730
    %884 = vmatpush.bf16.msra.mxu0 %v727
    %885 = vmatpush.bf16.msra.mxu0 %v724
    %886 = vmatpush.bf16.msra.mxu0 %v721
    %887 = vmatpush.bf16.msra.mxu0 %v718
    %888 = vmatpush.bf16.msra.mxu0 %v715
    %889 = vmatpush.bf16.msra.mxu0 %v712
    %890 = vmatmul.bf16.gmra.mxu0 %v206
    %v891 = vpop.f32.mrf.mxu0
    %v892 = vadd.f32 %v879, %v891
    %v893 = vpop.f32.mrf.mxu0
    %894 = vdwg.mxu0
    %895 = vmatpush.bf16.msra.mxu0 %v757
    %896 = vmatpush.bf16.msra.mxu0 %v754
    %897 = vmatpush.bf16.msra.mxu0 %v751
    %898 = vmatpush.bf16.msra.mxu0 %v748
    %899 = vmatpush.bf16.msra.mxu0 %v745
    %900 = vmatpush.bf16.msra.mxu0 %v742
    %901 = vmatpush.bf16.msra.mxu0 %v739
    %902 = vmatpush.bf16.msra.mxu0 %v736
    %903 = vmatmul.bf16.gmra.mxu0 %v207
    %v904 = vpop.f32.mrf.mxu0
    %v905 = vadd.f32 %v892, %v904
    %v906 = vpop.f32.mrf.mxu0
    %907 = vdwg.mxu0
    %908 = vmatpush.bf16.msra.mxu0 %v686
    %909 = vmatpush.bf16.msra.mxu0 %v683
    %910 = vmatpush.bf16.msra.mxu0 %v680
    %911 = vmatpush.bf16.msra.mxu0 %v677
    %912 = vmatpush.bf16.msra.mxu0 %v674
    %913 = vmatpush.bf16.msra.mxu0 %v671
    %914 = vmatpush.bf16.msra.mxu0 %v668
    %915 = vmatpush.bf16.msra.mxu0 %v665
    %916 = vmatmul.bf16.gmra.mxu0 %v204
    %v917 = vpop.f32.mrf.mxu0
    %v918 = vadd.f32 %v339, %v917
    %v919 = vpop.f32.mrf.mxu0
    %920 = vdwg.mxu0
    %921 = vmatpush.bf16.msra.mxu0 %v710
    %922 = vmatpush.bf16.msra.mxu0 %v707
    %923 = vmatpush.bf16.msra.mxu0 %v704
    %924 = vmatpush.bf16.msra.mxu0 %v701
    %925 = vmatpush.bf16.msra.mxu0 %v698
    %926 = vmatpush.bf16.msra.mxu0 %v695
    %927 = vmatpush.bf16.msra.mxu0 %v692
    %928 = vmatpush.bf16.msra.mxu0 %v689
    %929 = vmatmul.bf16.gmra.mxu0 %v205
    %v930 = vpop.f32.mrf.mxu0
    %v931 = vadd.f32 %v918, %v930
    %v932 = vpop.f32.mrf.mxu0
    %933 = vdwg.mxu0
    %934 = vmatpush.bf16.msra.mxu0 %v734
    %935 = vmatpush.bf16.msra.mxu0 %v731
    %936 = vmatpush.bf16.msra.mxu0 %v728
    %937 = vmatpush.bf16.msra.mxu0 %v725
    %938 = vmatpush.bf16.msra.mxu0 %v722
    %939 = vmatpush.bf16.msra.mxu0 %v719
    %940 = vmatpush.bf16.msra.mxu0 %v716
    %941 = vmatpush.bf16.msra.mxu0 %v713
    %942 = vmatmul.bf16.gmra.mxu0 %v206
    %v943 = vpop.f32.mrf.mxu0
    %v944 = vadd.f32 %v931, %v943
    %v945 = vpop.f32.mrf.mxu0
    %946 = vdwg.mxu0
    %947 = vmatpush.bf16.msra.mxu0 %v758
    %948 = vmatpush.bf16.msra.mxu0 %v755
    %949 = vmatpush.bf16.msra.mxu0 %v752
    %950 = vmatpush.bf16.msra.mxu0 %v749
    %951 = vmatpush.bf16.msra.mxu0 %v746
    %952 = vmatpush.bf16.msra.mxu0 %v743
    %953 = vmatpush.bf16.msra.mxu0 %v740
    %954 = vmatpush.bf16.msra.mxu0 %v737
    %955 = vmatmul.bf16.gmra.mxu0 %v207
    %v956 = vpop.f32.mrf.mxu0
    %v957 = vadd.f32 %v944, %v956
    %v958 = vpop.f32.mrf.mxu0
    %959 = vdwg.mxu0
    %960 = vmatpush.bf16.msra.mxu0 %v687
    %961 = vmatpush.bf16.msra.mxu0 %v684
    %962 = vmatpush.bf16.msra.mxu0 %v681
    %963 = vmatpush.bf16.msra.mxu0 %v678
    %964 = vmatpush.bf16.msra.mxu0 %v675
    %965 = vmatpush.bf16.msra.mxu0 %v672
    %966 = vmatpush.bf16.msra.mxu0 %v669
    %967 = vmatpush.bf16.msra.mxu0 %v666
    %968 = vmatmul.bf16.gmra.mxu0 %v204
    %v969 = vpop.f32.mrf.mxu0
    %v970 = vadd.f32 %v340, %v969
    %v971 = vpop.f32.mrf.mxu0
    %972 = vdwg.mxu0
    %973 = vmatpush.bf16.msra.mxu0 %v711
    %974 = vmatpush.bf16.msra.mxu0 %v708
    %975 = vmatpush.bf16.msra.mxu0 %v705
    %976 = vmatpush.bf16.msra.mxu0 %v702
    %977 = vmatpush.bf16.msra.mxu0 %v699
    %978 = vmatpush.bf16.msra.mxu0 %v696
    %979 = vmatpush.bf16.msra.mxu0 %v693
    %980 = vmatpush.bf16.msra.mxu0 %v690
    %981 = vmatmul.bf16.gmra.mxu0 %v205
    %v982 = vpop.f32.mrf.mxu0
    %v983 = vadd.f32 %v970, %v982
    %v984 = vpop.f32.mrf.mxu0
    %985 = vdwg.mxu0
    %986 = vmatpush.bf16.msra.mxu0 %v735
    %987 = vmatpush.bf16.msra.mxu0 %v732
    %988 = vmatpush.bf16.msra.mxu0 %v729
    %989 = vmatpush.bf16.msra.mxu0 %v726
    %990 = vmatpush.bf16.msra.mxu0 %v723
    %991 = vmatpush.bf16.msra.mxu0 %v720
    %992 = vmatpush.bf16.msra.mxu0 %v717
    %993 = vmatpush.bf16.msra.mxu0 %v714
    %994 = vmatmul.bf16.gmra.mxu0 %v206
    %v995 = vpop.f32.mrf.mxu0
    %v996 = vadd.f32 %v983, %v995
    %v997 = vpop.f32.mrf.mxu0
    %998 = vdwg.mxu0
    %999 = vmatpush.bf16.msra.mxu0 %v759
    %1000 = vmatpush.bf16.msra.mxu0 %v756
    %1001 = vmatpush.bf16.msra.mxu0 %v753
    %1002 = vmatpush.bf16.msra.mxu0 %v750
    %1003 = vmatpush.bf16.msra.mxu0 %v747
    %1004 = vmatpush.bf16.msra.mxu0 %v744
    %1005 = vmatpush.bf16.msra.mxu0 %v741
    %1006 = vmatpush.bf16.msra.mxu0 %v738
    %1007 = vmatmul.bf16.gmra.mxu0 %v207
    %v1008 = vpop.f32.mrf.mxu0
    %v1009 = vadd.f32 %v996, %v1008
    %v1010 = vpop.f32.mrf.mxu0
    %1011 = vdwg.mxu0
    %v1012 = vmax.f32 %v905, 0.0
    %v1013 = vmax.f32 %v957, 0.0
    %v1014 = vmax.f32 %v1009, 0.0
    %v1015 = vpack.c.bf16 %v1012, %v1012
    %v1016 = vpack.c.bf16 %v1013, %v1013
    %v1017 = vpack.c.bf16 %v1014, %v1014
    %v1018 = vld [vmem:[#allocation10] sm:$0xf]
    %v1019 = vld [vmem:[#allocation10 + $0x4] sm:$0xf]
    %v1020 = vld [vmem:[#allocation10 + $0x8] sm:$0xf]
    %v1021 = vld [vmem:[#allocation10 + $0xc] sm:$0xf]
    %v1022 = vld [vmem:[#allocation10 + $0x10] sm:$0xf]
    %v1023 = vld [vmem:[#allocation10 + $0x14] sm:$0xf]
    %v1024 = vld [vmem:[#allocation10 + $0x18] sm:$0xf]
    %v1025 = vld [vmem:[#allocation10 + $0x1c] sm:$0xf]
    %v1026 = vld [vmem:[#allocation10 + $0x20] sm:$0xf]
    %v1027 = vld [vmem:[#allocation10 + $0x24] sm:$0xf]
    %v1028 = vld [vmem:[#allocation10 + $0x28] sm:$0xf]
    %v1029 = vld [vmem:[#allocation10 + $0x2c] sm:$0xf]
    %v1030 = vld [vmem:[#allocation10 + $0x30] sm:$0xf]
    %v1031 = vld [vmem:[#allocation10 + $0x34] sm:$0xf]
    %v1032 = vld [vmem:[#allocation10 + $0x38] sm:$0xf]
    %v1033 = vld [vmem:[#allocation10 + $0x3c] sm:$0xf]
    %v1034 = vld [vmem:[#allocation10 + $0x40] sm:$0xf]
    %v1035 = vld [vmem:[#allocation10 + $0x44] sm:$0xf]
    %v1036 = vld [vmem:[#allocation10 + $0x48] sm:$0xf]
    %v1037 = vld [vmem:[#allocation10 + $0x4c] sm:$0xf]
    %v1038 = vld [vmem:[#allocation10 + $0x50] sm:$0xf]
    %v1039 = vld [vmem:[#allocation10 + $0x54] sm:$0xf]
    %v1040 = vld [vmem:[#allocation10 + $0x58] sm:$0xf]
    %v1041 = vld [vmem:[#allocation10 + $0x5c] sm:$0xf]
    %v1042 = vld [vmem:[#allocation10 + $0x60] sm:$0xf]
    %v1043 = vld [vmem:[#allocation10 + $0x64] sm:$0xf]
    %v1044 = vld [vmem:[#allocation10 + $0x68] sm:$0xf]
    %v1045 = vld [vmem:[#allocation10 + $0x6c] sm:$0xf]
    %v1046 = vld [vmem:[#allocation10 + $0x70] sm:$0xf]
    %v1047 = vld [vmem:[#allocation10 + $0x74] sm:$0xf]
    %v1048 = vld [vmem:[#allocation10 + $0x78] sm:$0xf]
    %v1049 = vld [vmem:[#allocation10 + $0x7c] sm:$0xf]
    %v1050 = vld [vmem:[#allocation10 + $0x80] sm:$0xf]
    %v1051 = vld [vmem:[#allocation10 + $0x84] sm:$0xf]
    %v1052 = vld [vmem:[#allocation10 + $0x88] sm:$0xf]
    %v1053 = vld [vmem:[#allocation10 + $0x8c] sm:$0xf]
    %v1054 = vld [vmem:[#allocation10 + $0x90] sm:$0xf]
    %v1055 = vld [vmem:[#allocation10 + $0x94] sm:$0xf]
    %v1056 = vld [vmem:[#allocation10 + $0x98] sm:$0xf]
    %v1057 = vld [vmem:[#allocation10 + $0x9c] sm:$0xf]
    %v1058 = vld [vmem:[#allocation10 + $0xa0] sm:$0xf]
    %v1059 = vld [vmem:[#allocation10 + $0xa4] sm:$0xf]
    %v1060 = vld [vmem:[#allocation10 + $0xa8] sm:$0xf]
    %v1061 = vld [vmem:[#allocation10 + $0xac] sm:$0xf]
    %v1062 = vld [vmem:[#allocation10 + $0xb0] sm:$0xf]
    %v1063 = vld [vmem:[#allocation10 + $0xb4] sm:$0xf]
    %v1064 = vld [vmem:[#allocation10 + $0xb8] sm:$0xf]
    %v1065 = vld [vmem:[#allocation10 + $0xbc] sm:$0xf]
    %v1066 = vld [vmem:[%s6] sm:$0x1]
    %v1068 = vperm.slane %v1066, 0
    %v1118 = vunpack.c.l.b16 %v1018
    %v1119 = vunpack.c.l.b16 %v1019
    %v1120 = vunpack.c.l.b16 %v1020
    %v1121 = vunpack.c.l.b16 %v1021
    %v1122 = vunpack.c.l.b16 %v1022
    %v1123 = vunpack.c.l.b16 %v1023
    %v1124 = vunpack.c.l.b16 %v1024
    %v1125 = vunpack.c.l.b16 %v1025
    %v1126 = vunpack.c.l.b16 %v1026
    %v1127 = vunpack.c.l.b16 %v1027
    %v1128 = vunpack.c.l.b16 %v1028
    %v1129 = vunpack.c.l.b16 %v1029
    %v1130 = vunpack.c.l.b16 %v1030
    %v1131 = vunpack.c.l.b16 %v1031
    %v1132 = vunpack.c.l.b16 %v1032
    %v1133 = vunpack.c.l.b16 %v1033
    %v1134 = vunpack.c.l.b16 %v1034
    %v1135 = vunpack.c.l.b16 %v1035
    %v1136 = vunpack.c.l.b16 %v1036
    %v1137 = vunpack.c.l.b16 %v1037
    %v1138 = vunpack.c.l.b16 %v1038
    %v1139 = vunpack.c.l.b16 %v1039
    %v1140 = vunpack.c.l.b16 %v1040
    %v1141 = vunpack.c.l.b16 %v1041
    %v1142 = vunpack.c.l.b16 %v1042
    %v1143 = vunpack.c.l.b16 %v1043
    %v1144 = vunpack.c.l.b16 %v1044
    %v1145 = vunpack.c.l.b16 %v1045
    %v1146 = vunpack.c.l.b16 %v1046
    %v1147 = vunpack.c.l.b16 %v1047
    %v1148 = vunpack.c.l.b16 %v1048
    %v1149 = vunpack.c.l.b16 %v1049
    %v1150 = vunpack.c.l.b16 %v1050
    %v1151 = vunpack.c.l.b16 %v1051
    %v1152 = vunpack.c.l.b16 %v1052
    %v1153 = vunpack.c.l.b16 %v1053
    %v1154 = vunpack.c.l.b16 %v1054
    %v1155 = vunpack.c.l.b16 %v1055
    %v1156 = vunpack.c.l.b16 %v1056
    %v1157 = vunpack.c.l.b16 %v1057
    %v1158 = vunpack.c.l.b16 %v1058
    %v1159 = vunpack.c.l.b16 %v1059
    %v1160 = vunpack.c.l.b16 %v1060
    %v1161 = vunpack.c.l.b16 %v1061
    %v1162 = vunpack.c.l.b16 %v1062
    %v1163 = vunpack.c.l.b16 %v1063
    %v1164 = vunpack.c.l.b16 %v1064
    %v1165 = vunpack.c.l.b16 %v1065
    %v1166 = vpack.c.b16 %v1119, %v1118
    %v1167 = vpack.c.b16 %v1121, %v1120
    %v1168 = vpack.c.b16 %v1123, %v1122
    %v1169 = vpack.c.b16 %v1125, %v1124
    %v1170 = vpack.c.b16 %v1127, %v1126
    %v1171 = vpack.c.b16 %v1129, %v1128
    %v1172 = vpack.c.b16 %v1131, %v1130
    %v1173 = vpack.c.b16 %v1133, %v1132
    %v1174 = vpack.c.b16 %v1135, %v1134
    %v1175 = vpack.c.b16 %v1137, %v1136
    %v1176 = vpack.c.b16 %v1139, %v1138
    %v1177 = vpack.c.b16 %v1141, %v1140
    %v1178 = vpack.c.b16 %v1143, %v1142
    %v1179 = vpack.c.b16 %v1145, %v1144
    %v1180 = vpack.c.b16 %v1147, %v1146
    %v1181 = vpack.c.b16 %v1149, %v1148
    %v1182 = vpack.c.b16 %v1151, %v1150
    %v1183 = vpack.c.b16 %v1153, %v1152
    %v1184 = vpack.c.b16 %v1155, %v1154
    %v1185 = vpack.c.b16 %v1157, %v1156
    %v1186 = vpack.c.b16 %v1159, %v1158
    %v1187 = vpack.c.b16 %v1161, %v1160
    %v1188 = vpack.c.b16 %v1163, %v1162
    %v1189 = vpack.c.b16 %v1165, %v1164
    %1214 = vmatpush.bf16.msra.mxu0 %v1173
    %1215 = vmatpush.bf16.msra.mxu0 %v1172
    %1216 = vmatpush.bf16.msra.mxu0 %v1171
    %1217 = vmatpush.bf16.msra.mxu0 %v1170
    %1218 = vmatpush.bf16.msra.mxu0 %v1169
    %1219 = vmatpush.bf16.msra.mxu0 %v1168
    %1220 = vmatpush.bf16.msra.mxu0 %v1167
    %1221 = vmatpush.bf16.msra.mxu0 %v1166
    %1222 = vmatmul.bf16.gmra.mxu0 %v1015
    %v1223 = vpop.f32.mrf.mxu0
    %v1224 = vadd.f32 %v1068, %v1223
    %v1225 = vpop.f32.mrf.mxu0
    %1226 = vdwg.mxu0
    %1227 = vmatpush.bf16.msra.mxu0 %v1181
    %1228 = vmatpush.bf16.msra.mxu0 %v1180
    %1229 = vmatpush.bf16.msra.mxu0 %v1179
    %1230 = vmatpush.bf16.msra.mxu0 %v1178
    %1231 = vmatpush.bf16.msra.mxu0 %v1177
    %1232 = vmatpush.bf16.msra.mxu0 %v1176
    %1233 = vmatpush.bf16.msra.mxu0 %v1175
    %1234 = vmatpush.bf16.msra.mxu0 %v1174
    %1235 = vmatmul.bf16.gmra.mxu0 %v1016
    %v1236 = vpop.f32.mrf.mxu0
    %v1237 = vadd.f32 %v1224, %v1236
    %v1238 = vpop.f32.mrf.mxu0
    %1239 = vdwg.mxu0
    %1240 = vmatpush.bf16.msra.mxu0 %v1189
    %1241 = vmatpush.bf16.msra.mxu0 %v1188
    %1242 = vmatpush.bf16.msra.mxu0 %v1187
    %1243 = vmatpush.bf16.msra.mxu0 %v1186
    %1244 = vmatpush.bf16.msra.mxu0 %v1185
    %1245 = vmatpush.bf16.msra.mxu0 %v1184
    %1246 = vmatpush.bf16.msra.mxu0 %v1183
    %1247 = vmatpush.bf16.msra.mxu0 %v1182
    %1248 = vmatmul.bf16.gmra.mxu0 %v1017
    %v1249 = vpop.f32.mrf.mxu0
    %v1250 = vadd.f32 %v1237, %v1249
    %v1251 = vpop.f32.mrf.mxu0
    %1252 = vdwg.mxu0
    %v1253 = vtanh.pop %v1250
    %v1254 = vld [vmem:[%s7] sm:$0x1]
    %v1256 = vperm.slane %v1254, 0
    %v1258 = vmul.f32 %v1253, %v1256
    %v1259 = vld [vmem:[%s8] sm:$0x1]
    %v1261 = vperm.slane %v1259, 0
    %v1263 = vadd.f32 %v1258, %v1261
    %1264 = vst [vmem:[#allocation11] sm:$0xff] %v1263
    // Predicated region
    $region58: #{tpu_custom_call.1} parent=1 // pred_check
      _
    $region59: #{tpu_custom_call.1} parent=1 // pred_check_branch
      %1266 = sbr.rel (0) target = $region61
    $region60: #{tpu_custom_call.1} parent=1 // pred_region
      %1268 = vsyncadd [#allocation4], 0
      %s1270 = sshll.u32 [#allocation11], 4
      %s1271 = int_to_ptr.vmem [resolvable:$true] %s1270
      %s1272 = sshll.u32 %s9, 4
      %s1273 = int_to_ptr.hbm [resolvable:$true] %s1272
      %1275 = dma.vmem_to_hbm [thread:$0]  %s1271, 128, %s1273, [#allocation4]
    $region61: #{tpu_custom_call.1} parent=1 // pred_fallthru
      _
    // Predicated region
    $region62: #{tpu_custom_call.1} parent=1 // pred_check
      _
    $region63: #{tpu_custom_call.1} parent=1 // pred_check_branch
      %1277 = sbr.rel (0) target = $region65
    $region64: #{tpu_custom_call.1} parent=1 // pred_region
      %1279 = dma.done [#allocation4], 128
    $region65: #{tpu_custom_call.1} parent=1 // pred_fallthru
      _
    %1280 = vsyncpa [#allocation3], 1
    %1281 = vsyncpa [#allocation6], 1
    %1282 = vsyncpa [#allocation9], 1
    %1283 = vsyncpa [#allocation4], 1

</llo_original>
